<compile_context>
chip_gen: v7x
topology: tpu7x:2x2x1
jax: 0.10.0
libtpu: 0.0.40
codegen_flags: <defaults>
</compile_context>

<pallas_src>
import functools

import jax
import jax.numpy as jnp
from jax import lax
from jax.experimental import pallas as pl
from jax.experimental.pallas import tpu as pltpu

DIM = 20      # logical feature width of the module
PAD = 128     # lane-friendly padded feature width
SUBLANE = 8   # batch padding granularity


def fancy_mlp_kernel(x_ref, wt_ref, b_ref, rw_ref, out_ref, *, valid_rows):
    x = x_ref[...]          # [Bp, PAD]  f32, padded rows/cols are zero
    wt = wt_ref[...]        # [PAD, PAD] W^T zero-padded outside [:20,:20]
    b = b_ref[...]          # [1, PAD]   bias zero-padded
    rw = rw_ref[...]        # [PAD, PAD] rand_weight zero-padded

    # x = self.linear(x)
    h = jnp.dot(x, wt, preferred_element_type=jnp.float32) + b
    # x = relu(x @ rand_weight + 1)
    h = jnp.maximum(jnp.dot(h, rw, preferred_element_type=jnp.float32) + 1.0, 0.0)
    # x = self.linear(x)   (same shared weights)
    h = jnp.dot(h, wt, preferred_element_type=jnp.float32) + b

    # Padded feature columns of h are exactly zero (wt columns/rows >= 20 are
    # zero); padded batch rows are not (bias + the "+1" leak in) -> mask them.
    rows = lax.broadcasted_iota(jnp.int32, (h.shape[0], 1), 0)
    h = h * (rows < valid_rows).astype(jnp.float32)

    # Fused reductions over the same live h vregs. Keep (1,1) shapes so the
    # scale math stays on the vector units (VPU/EUP), branch-free.
    s1 = jnp.sum(h, keepdims=True)        # (1,1)  sum(x)
    s2 = jnp.sum(h * h, keepdims=True)    # (1,1)  norm(x)^2

    # while x.norm() > 1: x /= 2
    # <=> scale = 2^-k with the smallest k >= 0 such that sumsq * 4^-k <= 1.
    safe = jnp.maximum(s2, 1.0)                               # guards sumsq <= 1 (incl. 0)
    k = jnp.maximum(jnp.ceil(0.5 * jnp.log2(safe)), 0.0)
    scale = jnp.exp2(-k)
    # one-step fixups so fp rounding in log2 can't break the strict '>' boundary
    k = jnp.where(s2 * scale * scale > 1.0, k + 1.0, k)       # rounded too low
    k_dn = jnp.maximum(k - 1.0, 0.0)
    s_dn = jnp.exp2(-k_dn)
    k = jnp.where((k > 0.0) & (s2 * s_dn * s_dn <= 1.0), k_dn, k)  # rounded too high
    scale = jnp.exp2(-k)

    # if x.norm() < 0.8: x *= 10    (norm^2 < 0.64)
    scale = jnp.where(s2 * scale * scale < 0.64, scale * 10.0, scale)

    # return x.sum()  -> scalar to SMEM (no padded VMEM tile writeback)
    out_ref[0, 0] = (s1 * scale)[0, 0]


def fancy_mlp(x, w, b, rand_w):
    """x: [B, 20] f32; w, rand_w: [20, 20]; b: [20]. Returns scalar f32."""
    B = x.shape[0]
    Bp = max(SUBLANE, ((B + SUBLANE - 1) // SUBLANE) * SUBLANE)

    # Zero-pad to lane/sublane friendly shapes; W is pre-transposed so the
    # kernel computes x @ W^T + b. Zero padding does not change the matmuls,
    # the norm, or the sum (padded batch rows are masked in-kernel).
    xp = jnp.zeros((Bp, PAD), jnp.float32).at[:B, :DIM].set(x.astype(jnp.float32))
    wtp = jnp.zeros((PAD, PAD), jnp.float32).at[:DIM, :DIM].set(w.T.astype(jnp.float32))
    bp = jnp.zeros((1, PAD), jnp.float32).at[0, :DIM].set(b.astype(jnp.float32))
    rwp = jnp.zeros((PAD, PAD), jnp.float32).at[:DIM, :DIM].set(rand_w.astype(jnp.float32))

    kernel = functools.partial(fancy_mlp_kernel, valid_rows=B)

    out = pl.pallas_call(
        kernel,
        out_shape=jax.ShapeDtypeStruct((1, 1), jnp.float32),
        grid_spec=pltpu.PrefetchScalarGridSpec(
            num_scalar_prefetch=0,
            grid=(),
            in_specs=[
                pl.BlockSpec((Bp, PAD), lambda: (0, 0)),
                pl.BlockSpec((PAD, PAD), lambda: (0, 0)),
                pl.BlockSpec((1, PAD), lambda: (0, 0)),
                pl.BlockSpec((PAD, PAD), lambda: (0, 0)),
            ],
            out_specs=pl.BlockSpec(memory_space=pltpu.MemorySpace.SMEM),
        ),
    )(xp, wtp, bp, rwp)
    return out[0, 0]


if __name__ == "__main__":
    key = jax.random.PRNGKey(0)
    k_x, k_w, k_b, k_rw = jax.random.split(key, 4)

    B = 2
    # nn.Linear(20, 20) init: U(-1/sqrt(20), 1/sqrt(20)) for weight and bias
    bound = 1.0 / jnp.sqrt(jnp.float32(DIM))
    w = jax.random.uniform(k_w, (DIM, DIM), jnp.float32, -bound, bound)
    b = jax.random.uniform(k_b, (DIM,), jnp.float32, -bound, bound)
    # torch.rand((20, 20)) -> U(0, 1)
    rand_w = jax.random.uniform(k_rw, (DIM, DIM), jnp.float32, 0.0, 1.0)

    x = jax.random.uniform(k_x, (B, DIM), jnp.float32, 0.0, 1.0)

    result = fancy_mlp(x, w, b, rand_w)
    jax.block_until_ready(result)

    # pure-JAX reference with the original loop semantics
    def ref(x, w, b, rw):
        h = x @ w.T + b
        h = jnp.maximum(h @ rw + 1.0, 0.0)
        h = h @ w.T + b
        n = jnp.linalg.norm(h)
        _, s = lax.while_loop(lambda c: c[0] * c[1] > 1.0,
                              lambda c: (c[0], c[1] * 0.5),
                              (n, jnp.float32(1.0)))
        s = jnp.where(n * s < 0.8, s * 10.0, s)
        return jnp.sum(h) * s

    expected = ref(x, w, b, rand_w)
    assert jnp.allclose(result, expected, rtol=1e-5, atol=1e-5), (result, expected)

    print("KERNEL_OK")
</pallas_src>

<mosaic_0001>
module attributes {stable_mosaic.version = 11 : i64} {
  func.func @fancy_mlp_kernel(%arg0: memref<8x128xf32, #tpu.memory_space<vmem>>, %arg1: memref<128x128xf32, #tpu.memory_space<vmem>>, %arg2: memref<1x128xf32, #tpu.memory_space<vmem>>, %arg3: memref<128x128xf32, #tpu.memory_space<vmem>>, %arg4: memref<1x1xf32, #tpu.memory_space<smem>>) attributes {dimension_semantics = [], scalar_prefetch = 0 : i64, scratch_operands = 0 : i64, tpu.core_type = #tpu.core_type<tc>} {
    %c0 = arith.constant 0 : index
    %c0_0 = arith.constant 0 : index
    %0 = vector.load %arg0[%c0, %c0_0] : memref<8x128xf32, #tpu.memory_space<vmem>>, vector<8x128xf32>
    %c0_1 = arith.constant 0 : index
    %c0_2 = arith.constant 0 : index
    %1 = vector.load %arg1[%c0_1, %c0_2] : memref<128x128xf32, #tpu.memory_space<vmem>>, vector<128x128xf32>
    %c0_3 = arith.constant 0 : index
    %c0_4 = arith.constant 0 : index
    %2 = vector.load %arg2[%c0_3, %c0_4] : memref<1x128xf32, #tpu.memory_space<vmem>>, vector<1x128xf32>
    %c0_5 = arith.constant 0 : index
    %c0_6 = arith.constant 0 : index
    %3 = vector.load %arg3[%c0_5, %c0_6] : memref<128x128xf32, #tpu.memory_space<vmem>>, vector<128x128xf32>
    %cst = arith.constant dense<0.000000e+00> : vector<8x128xf32>
    %4 = tpu.matmul %0, %1, %cst {dimension_numbers = #tpu.dot_dimension_numbers<[1], [0], [0], [1], [0, 0, 1, 1], [], []>} : vector<8x128xf32>, vector<128x128xf32>, vector<8x128xf32> -> vector<8x128xf32>
    %5 = vector.broadcast %2 : vector<1x128xf32> to vector<8x128xf32>
    %6 = arith.addf %4, %5 : vector<8x128xf32>
    %cst_7 = arith.constant dense<0.000000e+00> : vector<8x128xf32>
    %7 = tpu.matmul %6, %3, %cst_7 {dimension_numbers = #tpu.dot_dimension_numbers<[1], [0], [0], [1], [0, 0, 1, 1], [], []>} : vector<8x128xf32>, vector<128x128xf32>, vector<8x128xf32> -> vector<8x128xf32>
    %cst_8 = arith.constant 1.000000e+00 : f32
    %8 = vector.broadcast %cst_8 : f32 to vector<8x128xf32>
    %9 = arith.addf %7, %8 : vector<8x128xf32>
    %cst_9 = arith.constant 0.000000e+00 : f32
    %10 = vector.broadcast %cst_9 : f32 to vector<8x128xf32>
    %11 = arith.maximumf %9, %10 : vector<8x128xf32>
    %cst_10 = arith.constant dense<0.000000e+00> : vector<8x128xf32>
    %12 = tpu.matmul %11, %1, %cst_10 {dimension_numbers = #tpu.dot_dimension_numbers<[1], [0], [0], [1], [0, 0, 1, 1], [], []>} : vector<8x128xf32>, vector<128x128xf32>, vector<8x128xf32> -> vector<8x128xf32>
    %13 = vector.broadcast %2 : vector<1x128xf32> to vector<8x128xf32>
    %14 = arith.addf %12, %13 : vector<8x128xf32>
    %15 = tpu.iota {dimensions = array<i32: 0>} : vector<8x1xi32>
    %c2_i32 = arith.constant 2 : i32
    %16 = vector.broadcast %c2_i32 : i32 to vector<8x1xi32>
    %17 = arith.cmpi slt, %15, %16 : vector<8x1xi32>
    %18 = arith.extui %17 : vector<8x1xi1> to vector<8x1xi32>
    %19 = arith.sitofp %18 : vector<8x1xi32> to vector<8x1xf32>
    %20 = vector.broadcast %19 : vector<8x1xf32> to vector<8x128xf32>
    %21 = arith.mulf %14, %20 : vector<8x128xf32>
    %22 = vector.shape_cast %21 : vector<8x128xf32> to vector<1x8x128xf32>
    %cst_11 = arith.constant dense<0.000000e+00> : vector<1xf32>
    %23 = vector.multi_reduction <add>, %22, %cst_11 [1, 2] : vector<1x8x128xf32> to vector<1xf32>
    %24 = vector.shape_cast %23 : vector<1xf32> to vector<1x1x1xf32>
    %25 = vector.extract %24[0, 0, 0] : f32 from vector<1x1x1xf32>
    %26 = vector.broadcast %25 : f32 to vector<1x1xf32>
    %27 = arith.mulf %21, %21 : vector<8x128xf32>
    %28 = vector.shape_cast %27 : vector<8x128xf32> to vector<1x8x128xf32>
    %cst_12 = arith.constant dense<0.000000e+00> : vector<1xf32>
    %29 = vector.multi_reduction <add>, %28, %cst_12 [1, 2] : vector<1x8x128xf32> to vector<1xf32>
    %30 = vector.shape_cast %29 : vector<1xf32> to vector<1x1x1xf32>
    %31 = vector.extract %30[0, 0, 0] : f32 from vector<1x1x1xf32>
    %32 = vector.broadcast %31 : f32 to vector<1x1xf32>
    %cst_13 = arith.constant 1.000000e+00 : f32
    %33 = vector.broadcast %cst_13 : f32 to vector<1x1xf32>
    %34 = arith.maximumf %32, %33 : vector<1x1xf32>
    %35 = math.log %34 : vector<1x1xf32>
    %cst_14 = arith.constant 2.000000e+00 : f32
    %36 = math.log %cst_14 : f32
    %37 = vector.broadcast %36 : f32 to vector<1x1xf32>
    %38 = arith.divf %35, %37 : vector<1x1xf32>
    %cst_15 = arith.constant 5.000000e-01 : f32
    %39 = vector.broadcast %cst_15 : f32 to vector<1x1xf32>
    %40 = arith.mulf %39, %38 : vector<1x1xf32>
    %41 = math.ceil %40 : vector<1x1xf32>
    %cst_16 = arith.constant 0.000000e+00 : f32
    %42 = vector.broadcast %cst_16 : f32 to vector<1x1xf32>
    %43 = arith.maximumf %41, %42 : vector<1x1xf32>
    %cst_17 = arith.constant 0.000000e+00 : f32
    %44 = vector.broadcast %cst_17 : f32 to vector<1x1xf32>
    %45 = arith.subf %44, %43 : vector<1x1xf32>
    %46 = math.exp2 %45 : vector<1x1xf32>
    %47 = arith.mulf %32, %46 : vector<1x1xf32>
    %48 = arith.mulf %47, %46 : vector<1x1xf32>
    %cst_18 = arith.constant 1.000000e+00 : f32
    %49 = vector.broadcast %cst_18 : f32 to vector<1x1xf32>
    %50 = arith.cmpf ogt, %48, %49 : vector<1x1xf32>
    %cst_19 = arith.constant 1.000000e+00 : f32
    %51 = vector.broadcast %cst_19 : f32 to vector<1x1xf32>
    %52 = arith.addf %43, %51 : vector<1x1xf32>
    %53 = arith.select %50, %52, %43 : vector<1x1xi1>, vector<1x1xf32>
    %cst_20 = arith.constant 1.000000e+00 : f32
    %54 = vector.broadcast %cst_20 : f32 to vector<1x1xf32>
    %55 = arith.subf %53, %54 : vector<1x1xf32>
    %cst_21 = arith.constant 0.000000e+00 : f32
    %56 = vector.broadcast %cst_21 : f32 to vector<1x1xf32>
    %57 = arith.maximumf %55, %56 : vector<1x1xf32>
    %cst_22 = arith.constant 0.000000e+00 : f32
    %58 = vector.broadcast %cst_22 : f32 to vector<1x1xf32>
    %59 = arith.subf %58, %57 : vector<1x1xf32>
    %60 = math.exp2 %59 : vector<1x1xf32>
    %cst_23 = arith.constant 0.000000e+00 : f32
    %61 = vector.broadcast %cst_23 : f32 to vector<1x1xf32>
    %62 = arith.cmpf ogt, %53, %61 : vector<1x1xf32>
    %63 = arith.mulf %32, %60 : vector<1x1xf32>
    %64 = arith.mulf %63, %60 : vector<1x1xf32>
    %cst_24 = arith.constant 1.000000e+00 : f32
    %65 = vector.broadcast %cst_24 : f32 to vector<1x1xf32>
    %66 = arith.cmpf ole, %64, %65 : vector<1x1xf32>
    %67 = arith.andi %62, %66 : vector<1x1xi1>
    %68 = arith.select %67, %57, %53 : vector<1x1xi1>, vector<1x1xf32>
    %cst_25 = arith.constant 0.000000e+00 : f32
    %69 = vector.broadcast %cst_25 : f32 to vector<1x1xf32>
    %70 = arith.subf %69, %68 : vector<1x1xf32>
    %71 = math.exp2 %70 : vector<1x1xf32>
    %72 = arith.mulf %32, %71 : vector<1x1xf32>
    %73 = arith.mulf %72, %71 : vector<1x1xf32>
    %cst_26 = arith.constant 6.400000e-01 : f32
    %74 = vector.broadcast %cst_26 : f32 to vector<1x1xf32>
    %75 = arith.cmpf olt, %73, %74 : vector<1x1xf32>
    %cst_27 = arith.constant 1.000000e+01 : f32
    %76 = vector.broadcast %cst_27 : f32 to vector<1x1xf32>
    %77 = arith.mulf %71, %76 : vector<1x1xf32>
    %78 = arith.select %75, %77, %71 : vector<1x1xi1>, vector<1x1xf32>
    %79 = arith.mulf %26, %78 : vector<1x1xf32>
    %80 = vector.extract %79[0, 0] : f32 from vector<1x1xf32>
    %c0_28 = arith.constant 0 : index
    %c0_29 = arith.constant 0 : index
    %81 = memref.load %arg4[%c0_28, %c0_29] : memref<1x1xf32, #tpu.memory_space<smem>>
    memref.store %80, %arg4[%c0_28, %c0_29] : memref<1x1xf32, #tpu.memory_space<smem>>
    return
  }
}

</mosaic_0001>

<llo_original>
// kernel: tpu_custom_call.1
$region0: #{tpu_custom_call.1}
  #allocation0 [shape = 'u32[]', space=smem, size = 0x4, offset = 0x4, fixed_abs, tag = 'smem constant byte address 0x4 - core index']
  #allocation1 [shape = 'u32[144,128]{1,0:T(1,128)}', space=vmem, size = 0x12000, scoped, tag = 'internal scratch']
  %s0 = inlined_call_operand.hbm [shape: f32[8,128], index: 0, kind: input, shape index: {}]
  %s1 = inlined_call_operand.hbm [shape: f32[128,128], index: 1, kind: input, shape index: {}]
  %s2 = inlined_call_operand.vmem [shape: f32[1,128], index: 2, kind: input, shape index: {}]
  %s3 = inlined_call_operand.hbm [shape: f32[128,128], index: 3, kind: input, shape index: {}]
  %s4 = inlined_call_operand.hbm [shape: f32[1,1], index: 4, kind: output, shape index: {}]
  %s5 = sld [smem:[#allocation0]]
  $region38: #{tpu_custom_call.1} parent=0
    _
  %s7 = ssub.s32 1, %s5
  %s8 = scalar_select 0, %s7, %s5
  $region1: #{tpu_custom_call.1} parent=0
    #allocation2 [shape = 'u8[4096]{0}', space=vmem, size = 0x1000, scoped, tag = 'input window, operand 0, single buffered']
    #allocation3 [shape = 's32[1]{0}', space=sflag, size = 0x4, scoped, tag = 'scoped memory for tpu_custom_call.1']
    #allocation4 [shape = 's32[1]{0}', space=sflag, size = 0x4, scoped, tag = 'scoped memory for tpu_custom_call.1']
    #allocation5 [shape = 'u8[65536]{0}', space=vmem, size = 0x10000, scoped, tag = 'input window, operand 1, single buffered']
    #allocation6 [shape = 's32[1]{0}', space=sflag, size = 0x4, scoped, tag = 'scoped memory for tpu_custom_call.1']
    #allocation7 [shape = 'u8[65536]{0}', space=vmem, size = 0x10000, scoped, tag = 'input window, operand 3, single buffered']
    #allocation8 [shape = 'u8[512]{0}', space=smem, size = 0x200, scoped, tag = 'output window, operand 0, single buffered']
    %9 = vsyncpa [#allocation3], 0
    %10 = vsyncpa [#allocation6], 0
    %11 = vsyncpa [#allocation4], 0
    // Predicated region
    $region2: #{tpu_custom_call.1} parent=1 // pred_check
      _
    $region3: #{tpu_custom_call.1} parent=1 // pred_check_branch
      %13 = sbr.rel (0) target = $region5
    $region4: #{tpu_custom_call.1} parent=1 // pred_region
      %s15 = ssub.s32 128, 128
      %16 = vsyncadd [#allocation3], %s15
      %s18 = sshll.u32 [#allocation2], 4
      %s19 = int_to_ptr.vmem [resolvable:$true] %s18
      %21 = dma.hbm_to_vmem [thread:$0]  %s0, 128, %s19, [#allocation3]
    $region5: #{tpu_custom_call.1} parent=1 // pred_fallthru
      _
    // Predicated region
    $region6: #{tpu_custom_call.1} parent=1 // pred_check
      _
    $region7: #{tpu_custom_call.1} parent=1 // pred_check_branch
      %23 = sbr.rel (0) target = $region9
    $region8: #{tpu_custom_call.1} parent=1 // pred_region
      %s25 = ssub.s32 2048, 2048
      %26 = vsyncadd [#allocation6], %s25
      %s27 = sshll.u32 [#allocation5], 4
      %s28 = int_to_ptr.vmem [resolvable:$true] %s27
      %33 = dma.hbm_to_vmem [thread:$0]  %s1, 2048, %s28, [#allocation6], 128, 128, 8
    $region9: #{tpu_custom_call.1} parent=1 // pred_fallthru
      _
    // Predicated region
    $region10: #{tpu_custom_call.1} parent=1 // pred_check
      _
    $region11: #{tpu_custom_call.1} parent=1 // pred_check_branch
      %35 = sbr.rel (0) target = $region13
    $region12: #{tpu_custom_call.1} parent=1 // pred_region
      _
    $region13: #{tpu_custom_call.1} parent=1 // pred_fallthru
      _
    // Predicated region
    $region14: #{tpu_custom_call.1} parent=1 // pred_check
      _
    $region15: #{tpu_custom_call.1} parent=1 // pred_check_branch
      %37 = sbr.rel (0) target = $region17
    $region16: #{tpu_custom_call.1} parent=1 // pred_region
      %s39 = ssub.s32 2048, 2048
      %40 = vsyncadd [#allocation6], %s39
      %s41 = sshll.u32 [#allocation7], 4
      %s42 = int_to_ptr.vmem [resolvable:$true] %s41
      %47 = dma.hbm_to_vmem [thread:$0]  %s3, 2048, %s42, [#allocation6], 128, 128, 8
    $region17: #{tpu_custom_call.1} parent=1 // pred_fallthru
      _
    // Predicated region
    $region18: #{tpu_custom_call.1} parent=1 // pred_check
      _
    $region19: #{tpu_custom_call.1} parent=1 // pred_check_branch
      %49 = sbr.rel (0) target = $region21
    $region20: #{tpu_custom_call.1} parent=1 // pred_region
      %50 = dma.done [#allocation3], 128
    $region21: #{tpu_custom_call.1} parent=1 // pred_fallthru
      _
    // Predicated region
    $region22: #{tpu_custom_call.1} parent=1 // pred_check
      _
    $region23: #{tpu_custom_call.1} parent=1 // pred_check_branch
      %52 = sbr.rel (0) target = $region25
    $region24: #{tpu_custom_call.1} parent=1 // pred_region
      %53 = dma.done [#allocation6], 2048
    $region25: #{tpu_custom_call.1} parent=1 // pred_fallthru
      _
    // Predicated region
    $region26: #{tpu_custom_call.1} parent=1 // pred_check
      _
    $region27: #{tpu_custom_call.1} parent=1 // pred_check_branch
      %55 = sbr.rel (0) target = $region29
    $region28: #{tpu_custom_call.1} parent=1 // pred_region
      %56 = dma.done [#allocation6], 2048
    $region29: #{tpu_custom_call.1} parent=1 // pred_fallthru
      _
    %v57 = vld [vmem:[#allocation2] sm:$0xff]
    %v58 = vld [vmem:[#allocation5] sm:$0xff]
    %v59 = vld [vmem:[#allocation5 + $0x8] sm:$0xff]
    %v60 = vld [vmem:[#allocation5 + $0x10] sm:$0xff]
    %v61 = vld [vmem:[#allocation5 + $0x18] sm:$0xff]
    %v62 = vld [vmem:[#allocation5 + $0x20] sm:$0xff]
    %v63 = vld [vmem:[#allocation5 + $0x28] sm:$0xff]
    %v64 = vld [vmem:[#allocation5 + $0x30] sm:$0xff]
    %v65 = vld [vmem:[#allocation5 + $0x38] sm:$0xff]
    %v66 = vld [vmem:[#allocation5 + $0x40] sm:$0xff]
    %v67 = vld [vmem:[#allocation5 + $0x48] sm:$0xff]
    %v68 = vld [vmem:[#allocation5 + $0x50] sm:$0xff]
    %v69 = vld [vmem:[#allocation5 + $0x58] sm:$0xff]
    %v70 = vld [vmem:[#allocation5 + $0x60] sm:$0xff]
    %v71 = vld [vmem:[#allocation5 + $0x68] sm:$0xff]
    %v72 = vld [vmem:[#allocation5 + $0x70] sm:$0xff]
    %v73 = vld [vmem:[#allocation5 + $0x78] sm:$0xff]
    %v74 = vld [vmem:[%s2] sm:$0x1]
    %v75 = vld [vmem:[#allocation7] sm:$0xff]
    %v76 = vld [vmem:[#allocation7 + $0x8] sm:$0xff]
    %v77 = vld [vmem:[#allocation7 + $0x10] sm:$0xff]
    %v78 = vld [vmem:[#allocation7 + $0x18] sm:$0xff]
    %v79 = vld [vmem:[#allocation7 + $0x20] sm:$0xff]
    %v80 = vld [vmem:[#allocation7 + $0x28] sm:$0xff]
    %v81 = vld [vmem:[#allocation7 + $0x30] sm:$0xff]
    %v82 = vld [vmem:[#allocation7 + $0x38] sm:$0xff]
    %v83 = vld [vmem:[#allocation7 + $0x40] sm:$0xff]
    %v84 = vld [vmem:[#allocation7 + $0x48] sm:$0xff]
    %v85 = vld [vmem:[#allocation7 + $0x50] sm:$0xff]
    %v86 = vld [vmem:[#allocation7 + $0x58] sm:$0xff]
    %v87 = vld [vmem:[#allocation7 + $0x60] sm:$0xff]
    %v88 = vld [vmem:[#allocation7 + $0x68] sm:$0xff]
    %v89 = vld [vmem:[#allocation7 + $0x70] sm:$0xff]
    %v90 = vld [vmem:[#allocation7 + $0x78] sm:$0xff]
    %v92 = vlaneseq
    %v93 = vshrl.u32 %v92, 7
    %v94 = vsub.s32 0, %v93
    %v95 = vrot.slane %v74, %v94
    %97 = vmatprep.subr.mxu0 0.0
    %98 = vmatpush1.msra.mxu0 %v58
    %99 = vmatprep.subr.mxu0 0.0
    %100 = vmatpush1.msra.mxu0 %v59
    %101 = vmatprep.subr.mxu0 0.0
    %102 = vmatpush1.msra.mxu0 %v60
    %103 = vmatprep.subr.mxu0 0.0
    %104 = vmatpush1.msra.mxu0 %v61
    %105 = vmatprep.subr.mxu0 0.0
    %106 = vmatpush1.msra.mxu0 %v62
    %107 = vmatprep.subr.mxu0 0.0
    %108 = vmatpush1.msra.mxu0 %v63
    %109 = vmatprep.subr.mxu0 0.0
    %110 = vmatpush1.msra.mxu0 %v64
    %111 = vmatprep.subr.mxu0 0.0
    %112 = vmatpush1.msra.mxu0 %v65
    %113 = vmatprep.subr.mxu0 0.0
    %114 = vmatpush1.msra.mxu0 %v66
    %115 = vmatprep.subr.mxu0 0.0
    %116 = vmatpush1.msra.mxu0 %v67
    %117 = vmatprep.subr.mxu0 0.0
    %118 = vmatpush1.msra.mxu0 %v68
    %119 = vmatprep.subr.mxu0 0.0
    %120 = vmatpush1.msra.mxu0 %v69
    %121 = vmatprep.subr.mxu0 0.0
    %122 = vmatpush1.msra.mxu0 %v70
    %123 = vmatprep.subr.mxu0 0.0
    %124 = vmatpush1.msra.mxu0 %v71
    %125 = vmatprep.subr.mxu0 0.0
    %126 = vmatpush1.msra.mxu0 %v72
    %127 = vmatprep.subr.mxu0 0.0
    %128 = vmatpush1.msra.mxu0 %v73
    %129 = vmatprep.subr.mxu0 0.0
    %130 = vmatpush1.msra.mxu0 0.0
    %131 = vmatprep.subr.mxu0 0.0
    %132 = vmatpush1.msra.mxu0 0.0
    %133 = vmatprep.subr.mxu0 0.0
    %134 = vmatpush1.msra.mxu0 0.0
    %135 = vmatprep.subr.mxu0 0.0
    %136 = vmatpush1.msra.mxu0 0.0
    %137 = vmatprep.subr.mxu0 0.0
    %138 = vmatpush1.msra.mxu0 0.0
    %139 = vmatprep.subr.mxu0 0.0
    %140 = vmatpush1.msra.mxu0 0.0
    %141 = vmatprep.subr.mxu0 0.0
    %142 = vmatpush1.msra.mxu0 0.0
    %143 = vmatprep.subr.mxu0 0.0
    %144 = vmatpush1.msra.mxu0 0.0
    %145 = vmatprep.subr.mxu0 0.0
    %146 = vmatpush1.msra.mxu0 0.0
    %147 = vmatprep.subr.mxu0 0.0
    %148 = vmatpush1.msra.mxu0 0.0
    %149 = vmatprep.subr.mxu0 0.0
    %150 = vmatpush1.msra.mxu0 0.0
    %151 = vmatprep.subr.mxu0 0.0
    %152 = vmatpush1.msra.mxu0 0.0
    %153 = vmatprep.subr.mxu0 0.0
    %154 = vmatpush1.msra.mxu0 0.0
    %155 = vmatprep.subr.mxu0 0.0
    %156 = vmatpush1.msra.mxu0 0.0
    %157 = vmatprep.subr.mxu0 0.0
    %158 = vmatpush1.msra.mxu0 0.0
    %159 = vmatprep.subr.mxu0 0.0
    %160 = vmatpush1.msra.mxu0 0.0
    %161 = vmatprep.mubr.f32.mxu0 0.0
    %162 = vmatmul.mubr.f32.gmra.mrb[0].mxu0 %v57
    %v163 = vpop.f32.mrb[0].mxu0
    %v164 = vadd.f32 %v95, %v163
    %v165 = vpop.f32.mrb[0].mxu0
    %166 = vdwg.mxu0
    %167 = vmatprep.subr.mxu0 0.0
    %168 = vmatpush1.msra.mxu0 %v75
    %169 = vmatprep.subr.mxu0 0.0
    %170 = vmatpush1.msra.mxu0 %v76
    %171 = vmatprep.subr.mxu0 0.0
    %172 = vmatpush1.msra.mxu0 %v77
    %173 = vmatprep.subr.mxu0 0.0
    %174 = vmatpush1.msra.mxu0 %v78
    %175 = vmatprep.subr.mxu0 0.0
    %176 = vmatpush1.msra.mxu0 %v79
    %177 = vmatprep.subr.mxu0 0.0
    %178 = vmatpush1.msra.mxu0 %v80
    %179 = vmatprep.subr.mxu0 0.0
    %180 = vmatpush1.msra.mxu0 %v81
    %181 = vmatprep.subr.mxu0 0.0
    %182 = vmatpush1.msra.mxu0 %v82
    %183 = vmatprep.subr.mxu0 0.0
    %184 = vmatpush1.msra.mxu0 %v83
    %185 = vmatprep.subr.mxu0 0.0
    %186 = vmatpush1.msra.mxu0 %v84
    %187 = vmatprep.subr.mxu0 0.0
    %188 = vmatpush1.msra.mxu0 %v85
    %189 = vmatprep.subr.mxu0 0.0
    %190 = vmatpush1.msra.mxu0 %v86
    %191 = vmatprep.subr.mxu0 0.0
    %192 = vmatpush1.msra.mxu0 %v87
    %193 = vmatprep.subr.mxu0 0.0
    %194 = vmatpush1.msra.mxu0 %v88
    %195 = vmatprep.subr.mxu0 0.0
    %196 = vmatpush1.msra.mxu0 %v89
    %197 = vmatprep.subr.mxu0 0.0
    %198 = vmatpush1.msra.mxu0 %v90
    %199 = vmatprep.subr.mxu0 0.0
    %200 = vmatpush1.msra.mxu0 0.0
    %201 = vmatprep.subr.mxu0 0.0
    %202 = vmatpush1.msra.mxu0 0.0
    %203 = vmatprep.subr.mxu0 0.0
    %204 = vmatpush1.msra.mxu0 0.0
    %205 = vmatprep.subr.mxu0 0.0
    %206 = vmatpush1.msra.mxu0 0.0
    %207 = vmatprep.subr.mxu0 0.0
    %208 = vmatpush1.msra.mxu0 0.0
    %209 = vmatprep.subr.mxu0 0.0
    %210 = vmatpush1.msra.mxu0 0.0
    %211 = vmatprep.subr.mxu0 0.0
    %212 = vmatpush1.msra.mxu0 0.0
    %213 = vmatprep.subr.mxu0 0.0
    %214 = vmatpush1.msra.mxu0 0.0
    %215 = vmatprep.subr.mxu0 0.0
    %216 = vmatpush1.msra.mxu0 0.0
    %217 = vmatprep.subr.mxu0 0.0
    %218 = vmatpush1.msra.mxu0 0.0
    %219 = vmatprep.subr.mxu0 0.0
    %220 = vmatpush1.msra.mxu0 0.0
    %221 = vmatprep.subr.mxu0 0.0
    %222 = vmatpush1.msra.mxu0 0.0
    %223 = vmatprep.subr.mxu0 0.0
    %224 = vmatpush1.msra.mxu0 0.0
    %225 = vmatprep.subr.mxu0 0.0
    %226 = vmatpush1.msra.mxu0 0.0
    %227 = vmatprep.subr.mxu0 0.0
    %228 = vmatpush1.msra.mxu0 0.0
    %229 = vmatprep.subr.mxu0 0.0
    %230 = vmatpush1.msra.mxu0 0.0
    %231 = vmatprep.mubr.f32.mxu0 0.0
    %232 = vmatmul.mubr.f32.gmra.mrb[0].mxu0 %v164
    %v233 = vpop.f32.mrb[0].mxu0
    %v234 = vadd.f32 1.0, %v233
    %v235 = vpop.f32.mrb[0].mxu0
    %236 = vdwg.mxu0
    %v237 = vmax.f32 %v234, 0.0
    %238 = vmatprep.subr.mxu0 0.0
    %239 = vmatpush1.msra.mxu0 %v58
    %240 = vmatprep.subr.mxu0 0.0
    %241 = vmatpush1.msra.mxu0 %v59
    %242 = vmatprep.subr.mxu0 0.0
    %243 = vmatpush1.msra.mxu0 %v60
    %244 = vmatprep.subr.mxu0 0.0
    %245 = vmatpush1.msra.mxu0 %v61
    %246 = vmatprep.subr.mxu0 0.0
    %247 = vmatpush1.msra.mxu0 %v62
    %248 = vmatprep.subr.mxu0 0.0
    %249 = vmatpush1.msra.mxu0 %v63
    %250 = vmatprep.subr.mxu0 0.0
    %251 = vmatpush1.msra.mxu0 %v64
    %252 = vmatprep.subr.mxu0 0.0
    %253 = vmatpush1.msra.mxu0 %v65
    %254 = vmatprep.subr.mxu0 0.0
    %255 = vmatpush1.msra.mxu0 %v66
    %256 = vmatprep.subr.mxu0 0.0
    %257 = vmatpush1.msra.mxu0 %v67
    %258 = vmatprep.subr.mxu0 0.0
    %259 = vmatpush1.msra.mxu0 %v68
    %260 = vmatprep.subr.mxu0 0.0
    %261 = vmatpush1.msra.mxu0 %v69
    %262 = vmatprep.subr.mxu0 0.0
    %263 = vmatpush1.msra.mxu0 %v70
    %264 = vmatprep.subr.mxu0 0.0
    %265 = vmatpush1.msra.mxu0 %v71
    %266 = vmatprep.subr.mxu0 0.0
    %267 = vmatpush1.msra.mxu0 %v72
    %268 = vmatprep.subr.mxu0 0.0
    %269 = vmatpush1.msra.mxu0 %v73
    %270 = vmatprep.subr.mxu0 0.0
    %271 = vmatpush1.msra.mxu0 0.0
    %272 = vmatprep.subr.mxu0 0.0
    %273 = vmatpush1.msra.mxu0 0.0
    %274 = vmatprep.subr.mxu0 0.0
    %275 = vmatpush1.msra.mxu0 0.0
    %276 = vmatprep.subr.mxu0 0.0
    %277 = vmatpush1.msra.mxu0 0.0
    %278 = vmatprep.subr.mxu0 0.0
    %279 = vmatpush1.msra.mxu0 0.0
    %280 = vmatprep.subr.mxu0 0.0
    %281 = vmatpush1.msra.mxu0 0.0
    %282 = vmatprep.subr.mxu0 0.0
    %283 = vmatpush1.msra.mxu0 0.0
    %284 = vmatprep.subr.mxu0 0.0
    %285 = vmatpush1.msra.mxu0 0.0
    %286 = vmatprep.subr.mxu0 0.0
    %287 = vmatpush1.msra.mxu0 0.0
    %288 = vmatprep.subr.mxu0 0.0
    %289 = vmatpush1.msra.mxu0 0.0
    %290 = vmatprep.subr.mxu0 0.0
    %291 = vmatpush1.msra.mxu0 0.0
    %292 = vmatprep.subr.mxu0 0.0
    %293 = vmatpush1.msra.mxu0 0.0
    %294 = vmatprep.subr.mxu0 0.0
    %295 = vmatpush1.msra.mxu0 0.0
    %296 = vmatprep.subr.mxu0 0.0
    %297 = vmatpush1.msra.mxu0 0.0
    %298 = vmatprep.subr.mxu0 0.0
    %299 = vmatpush1.msra.mxu0 0.0
    %300 = vmatprep.subr.mxu0 0.0
    %301 = vmatpush1.msra.mxu0 0.0
    %302 = vmatprep.mubr.f32.mxu0 0.0
    %303 = vmatmul.mubr.f32.gmra.mrb[0].mxu0 %v237
    %v304 = vpop.f32.mrb[0].mxu0
    %v305 = vadd.f32 %v95, %v304
    %v306 = vpop.f32.mrb[0].mxu0
    %307 = vdwg.mxu0
    %v308 = vlaneseq
    %v309 = vshrl.u32 %v308, 7
    %vm310 = vcmp.lt.s32.totalorder %v309, 2
    %v311 = vsel %vm310, 1, 0
    %v312 = vcvt.s32.f32 %v311
    %v313 = vmul.f32 %v305, %v312
    %314 = vadd.xlane.f32.xlu0 %v313
    %v315 = vpop.xlane.xlu0 %314
    %v316 = vrot.slane %v315, 4
    %v317 = vadd.f32 %v315, %v316
    %v318 = vrot.slane %v317, 2
    %v319 = vadd.f32 %v317, %v318
    %v320 = vrot.slane %v319, 1
    %v321 = vadd.f32 %v319, %v320
    %s322 = vtos %v321
    %v323 = vstv %s322
    %v324 = vmul.f32 %v313, %v313
    %325 = vadd.xlane.f32.xlu0 %v324
    %v326 = vpop.xlane.xlu0 %325
    %v327 = vrot.slane %v326, 4
    %v328 = vadd.f32 %v326, %v327
    %v329 = vrot.slane %v328, 2
    %v330 = vadd.f32 %v328, %v329
    %v331 = vrot.slane %v330, 1
    %v332 = vadd.f32 %v330, %v331
    %s333 = vtos %v332
    %v334 = vstv %s333
    %v335 = vmax.f32 %v334, 1.0
    %v336 = vlog2.pop %v335
    %v337 = vmul.f32 %v336, 0.6931472
    %v338 = vrcp.pop 0.6931472
    %v339 = vmul.f32 %v337, %v338
    %v340 = vmul.f32 %v339, 0.5
    %v341 = vceil.f32 %v340
    %v342 = vmax.f32 %v341, 0.0
    %v343 = vsub.f32 0.0, %v342
    %v344 = vpow.pop %v343
    %v345 = vmul.f32 %v334, %v344
    %v346 = vmul.f32 %v345, %v344
    %vm347 = vcmp.gt.f32.partialorder %v346, 1.0
    %v348 = vadd.f32 %v342, 1.0
    %v349 = vsel %vm347, %v348, %v342
    %v350 = vsub.f32 %v349, 1.0
    %v351 = vmax.f32 %v350, 0.0
    %v352 = vsub.f32 0.0, %v351
    %v353 = vpow.pop %v352
    %vm354 = vcmp.gt.f32.partialorder %v349, 0.0
    %v355 = vmul.f32 %v334, %v353
    %v356 = vmul.f32 %v355, %v353
    %vm357 = vcmp.le.f32.partialorder %v356, 1.0
    %vm358 = vmand %vm354, %vm357
    %v359 = vsel %vm358, %v351, %v349
    %v360 = vsub.f32 0.0, %v359
    %v361 = vpow.pop %v360
    %v362 = vmul.f32 %v334, %v361
    %v363 = vmul.f32 %v362, %v361
    %vm364 = vcmp.lt.f32.partialorder %v363, 0.64
    %v365 = vmul.f32 %v361, 10.0
    %v366 = vsel %vm364, %v365, %v361
    %v367 = vmul.f32 %v323, %v366
    %s368 = vtos %v367
    %s369 = scalar_lea.smem [#allocation8], 0
    %370 = sst [smem:[%s369]] %s368
    // Predicated region
    $region30: #{tpu_custom_call.1} parent=1 // pred_check
      _
    $region31: #{tpu_custom_call.1} parent=1 // pred_check_branch
      %372 = sbr.rel (0) target = $region33
    $region32: #{tpu_custom_call.1} parent=1 // pred_region
      %s374 = ssub.s32 16, 16
      %375 = vsyncadd [#allocation4], %s374
      %378 = dma.smem_to_hbm [#allocation8], 16, %s4, [#allocation4]
    $region33: #{tpu_custom_call.1} parent=1 // pred_fallthru
      _
    // Predicated region
    $region34: #{tpu_custom_call.1} parent=1 // pred_check
      _
    $region35: #{tpu_custom_call.1} parent=1 // pred_check_branch
      %380 = sbr.rel (0) target = $region37
    $region36: #{tpu_custom_call.1} parent=1 // pred_region
      %381 = dma.done [#allocation4], 16
    $region37: #{tpu_custom_call.1} parent=1 // pred_fallthru
      _
    %382 = sfence
    %383 = vsyncpa [#allocation3], 1
    %384 = vsyncpa [#allocation6], 1
    %385 = vsyncpa [#allocation4], 1

</llo_original>
